<compile_context>
chip_gen: v7x
topology: tpu7x:2x2x1
jax: 0.10.0
libtpu: 0.0.40
codegen_flags: <defaults>
</compile_context>

<pallas_src>
import functools

import jax
import jax.numpy as jnp
import numpy as np
from jax.experimental import pallas as pl
from jax.experimental.pallas import tpu as pltpu

_LANES = 128                      # lane-dense packing width (one full vreg row)
_TARGET_TILE_BYTES = 1 << 20      # ~1 MiB per input tile (auto double-buffered)


def _accumulate(loss, n_valid, acc_ref, tile_idx, tile_rows, num_tiles):
    """Add this tile's partial sums to acc_ref, exactly masking padded elements.

    Only the single tile straddling `n_valid` pays for mask construction; tiles
    that are entirely valid do a plain add; tiles that are entirely padding are
    skipped.
    """
    tile_elems = tile_rows * _LANES
    full = n_valid // tile_elems            # tiles that are entirely valid
    rem = n_valid - full * tile_elems       # valid elements in the boundary tile

    def _partial(l):                        # layout-preserving sublane-group sum
        return l.reshape(tile_rows // 8, 8, _LANES).sum(axis=0)

    if full >= num_tiles:                   # this input needs no masking at all
        acc_ref[...] += _partial(loss)
        return
    if full > 0:
        @pl.when(tile_idx < full)
        def _():
            acc_ref[...] += _partial(loss)
    if rem > 0:
        @pl.when(tile_idx == full)          # single boundary tile only
        def _():
            row = jax.lax.broadcasted_iota(jnp.int32, (tile_rows, _LANES), 0)
            col = jax.lax.broadcasted_iota(jnp.int32, (tile_rows, _LANES), 1)
            mask = (row * _LANES + col) < rem        # within-tile index
            acc_ref[...] += _partial(jnp.where(mask, loss, 0.0))


def _minimax_disc_loss_kernel(dx_ref, dgz_ref, out_ref, acc_dx_ref, acc_dgz_ref,
                              *, n_dx, n_dgz, target_real, scale_dx, scale_dgz,
                              tile_rows, tiles_per_slice, num_tiles):
    c = pl.program_id(0)                    # parallel slice (megacore on v7x)
    i = pl.program_id(1)                    # reduction step within the slice
    tile_idx = c * tiles_per_slice + i

    @pl.when(i == 0)
    def _():
        acc_dx_ref[...] = jnp.zeros_like(acc_dx_ref)
        acc_dgz_ref[...] = jnp.zeros_like(acc_dgz_ref)

    dx = dx_ref[...].astype(jnp.float32)
    dgz = dgz_ref[...].astype(jnp.float32)

    # Numerically-stable BCE-with-logits (matches PyTorch's formulation):
    #   bce(x, t) = max(x, 0) - x * t + log(1 + exp(-|x|))
    # NOTE: exp + log1p are 2 EUP ops/element/input; on v7x (3.2 TB/s HBM) this
    # kernel may be EUP-bound rather than HBM-bound -- tile tuning won't help there.
    loss_dx = jnp.maximum(dx, 0.0) + jnp.log1p(jnp.exp(-jnp.abs(dx)))
    if target_real != 0.0:
        loss_dx = loss_dx - dx * target_real
    # Target is 0 for the fake branch, so the -x*t term vanishes.
    loss_dgz = jnp.maximum(dgz, 0.0) + jnp.log1p(jnp.exp(-jnp.abs(dgz)))

    _accumulate(loss_dx, n_dx, acc_dx_ref, tile_idx, tile_rows, num_tiles)
    _accumulate(loss_dgz, n_dgz, acc_dgz_ref, tile_idx, tile_rows, num_tiles)

    @pl.when(i == pl.num_programs(1) - 1)
    def _():
        # Per-input reduction scaling applied once in the epilogue, not per step.
        out_ref[...] = acc_dx_ref[...] * scale_dx + acc_dgz_ref[...] * scale_dgz


def _kernel_dtype(x):
    if x.dtype in (jnp.float32, jnp.bfloat16, jnp.float16):
        return x.dtype
    return np.dtype('float32')


def _pack(x, dtype, rows):
    """Flatten + (only if needed) tail-pad + lane-dense reshape to (rows, 128)."""
    flat = x.reshape(-1)
    if flat.dtype != dtype:
        flat = flat.astype(dtype)
    total = rows * _LANES
    if flat.size != total:
        # TODO(synk): for very large inputs whose size is not a multiple of the
        # padded geometry this still materializes one padded copy; a manual-DMA
        # tail path would remove that extra HBM traffic.
        flat = jnp.pad(flat, (0, total - flat.size))
    return flat.reshape(rows, _LANES)


@functools.partial(jax.jit, static_argnames=("label_smoothing", "reduction"))
def minimax_discriminator_loss(dx, dgz, label_smoothing=0.0, reduction='mean'):
    # TODO(synk): reduction='none' (returns an unreduced (N, *) tensor) is not
    # implemented in the kernel; only 'mean' and 'sum' are supported.
    assert reduction in ('mean', 'sum')

    n_dx = int(dx.size)
    n_dgz = int(dgz.size)

    dt_dx = _kernel_dtype(dx)
    dt_dgz = _kernel_dtype(dgz)
    itemsize = max(np.dtype(dt_dx).itemsize, np.dtype(dt_dgz).itemsize)

    # Adaptive lane-dense geometry shared by both inputs (they have identical
    # shapes in torchgan's training loop; mismatched sizes still work -- the
    # smaller one just carries more padding, which the kernel skips).
    n_max = max(n_dx, n_dgz, 1)
    rows_data = -(-n_max // _LANES)                       # rows holding real data
    rows8 = -(-rows_data // 8) * 8                        # sublane multiple
    max_tile_rows = max(8, (_TARGET_TILE_BYTES // (_LANES * itemsize)) // 8 * 8)
    tile_rows = min(max_tile_rows, rows8)
    num_tiles = -(-rows8 // tile_rows)
    if num_tiles >= 8:                                    # enough work for 2 TCs
        num_tiles = -(-num_tiles // 2) * 2                # even split (v7x)
        num_slices = 2
    else:
        num_slices = 1
    tiles_per_slice = num_tiles // num_slices
    rows = num_tiles * tile_rows

    dx2 = _pack(dx, dt_dx, rows)
    dgz2 = _pack(dgz, dt_dgz, rows)

    scale_dx = (1.0 / max(n_dx, 1)) if reduction == 'mean' else 1.0
    scale_dgz = (1.0 / max(n_dgz, 1)) if reduction == 'mean' else 1.0

    kernel = functools.partial(
        _minimax_disc_loss_kernel,
        n_dx=n_dx, n_dgz=n_dgz,
        target_real=float(1.0 - label_smoothing),
        scale_dx=scale_dx, scale_dgz=scale_dgz,
        tile_rows=tile_rows, tiles_per_slice=tiles_per_slice,
        num_tiles=num_tiles)

    in_map = lambda c, i: (c * tiles_per_slice + i, 0)

    partials = pl.pallas_call(
        kernel,
        out_shape=jax.ShapeDtypeStruct((num_slices * 8, _LANES), jnp.float32),
        grid=(num_slices, tiles_per_slice),
        in_specs=[pl.BlockSpec((tile_rows, _LANES), in_map),
                  pl.BlockSpec((tile_rows, _LANES), in_map)],
        out_specs=pl.BlockSpec((8, _LANES), lambda c, i: (c, 0)),
        scratch_shapes=[pltpu.VMEM((8, _LANES), jnp.float32),
                        pltpu.VMEM((8, _LANES), jnp.float32)],
        compiler_params=pltpu.CompilerParams(
            dimension_semantics=("parallel", "arbitrary")),
    )(dx2, dgz2)

    # Tiny final cross-slice / cross-lane reduce (scales already applied).
    return jnp.sum(partials)


class MinimaxDiscriminatorLoss:
    """JAX/Pallas port of torchgan.losses.MinimaxDiscriminatorLoss (forward only)."""

    def __init__(self, label_smoothing=0.0, reduction='mean',
                 override_train_ops=None):
        self.label_smoothing = label_smoothing
        self.reduction = reduction
        self.override_train_ops = override_train_ops
        self.arg_map = {}

    def forward(self, dx, dgz):
        return minimax_discriminator_loss(dx, dgz,
                                          label_smoothing=self.label_smoothing,
                                          reduction=self.reduction)

    __call__ = forward


if __name__ == "__main__":
    key = jax.random.PRNGKey(0)
    k1, k2, k3, k4 = jax.random.split(key, 4)

    def bce_logits_ref(x, t):
        x = x.astype(jnp.float32)
        return jnp.maximum(x, 0.0) - x * t + jnp.log1p(jnp.exp(-jnp.abs(x)))

    # Case 1: typical discriminator logits (N, 1), mean reduction + smoothing.
    dx = jax.random.normal(k1, (8, 1), dtype=jnp.float32)
    dgz = jax.random.normal(k2, (8, 1), dtype=jnp.float32)
    loss_mod = MinimaxDiscriminatorLoss(label_smoothing=0.2, reduction='mean')
    loss = loss_mod(dx, dgz)
    jax.block_until_ready(loss)
    ref = jnp.mean(bce_logits_ref(dx, 0.8)) + jnp.mean(bce_logits_ref(dgz, 0.0))
    assert jnp.allclose(loss, ref, atol=1e-5, rtol=1e-5), (loss, ref)

    # Case 2: multi-dim bf16 logits, sum reduction (exercises masking + bf16 path).
    dx2 = (jax.random.normal(k3, (4, 3, 7, 5), dtype=jnp.float32) * 2.0).astype(jnp.bfloat16)
    dgz2 = (jax.random.normal(k4, (4, 3, 7, 5), dtype=jnp.float32) * 2.0).astype(jnp.bfloat16)
    loss_mod2 = MinimaxDiscriminatorLoss(label_smoothing=0.0, reduction='sum')
    loss2 = loss_mod2(dx2, dgz2)
    jax.block_until_ready(loss2)
    ref2 = jnp.sum(bce_logits_ref(dx2, 1.0)) + jnp.sum(bce_logits_ref(dgz2, 0.0))
    assert jnp.allclose(loss2, ref2, atol=1e-3, rtol=1e-3), (loss2, ref2)

    print("KERNEL_OK")
</pallas_src>

<mosaic_0001>
module attributes {stable_mosaic.version = 11 : i64} {
  func.func @_minimax_disc_loss_kernel(%arg0: i32, %arg1: i32, %arg2: memref<8x128xf32, #tpu.memory_space<vmem>>, %arg3: memref<8x128xf32, #tpu.memory_space<vmem>>, %arg4: memref<8x128xf32, #tpu.memory_space<vmem>>, %arg5: memref<8x128xf32, #tpu.memory_space<vmem>>, %arg6: memref<8x128xf32, #tpu.memory_space<vmem>>) attributes {dimension_semantics = [#tpu.dimension_semantics<parallel>, #tpu.dimension_semantics<arbitrary>], iteration_bounds = array<i64: 1, 1>, scalar_prefetch = 0 : i64, scratch_operands = 2 : i64, tpu.core_type = #tpu.core_type<tc>, window_params = [{transform_indices = @transform_0, window_bounds = array<i64: 8, 128>}, {transform_indices = @transform_1, window_bounds = array<i64: 8, 128>}, {transform_indices = @transform_2, window_bounds = array<i64: 8, 128>}]} {
    %c1_i32 = arith.constant 1 : i32
    %0 = arith.muli %arg0, %c1_i32 : i32
    %1 = arith.addi %0, %arg1 : i32
    %c0_i32 = arith.constant 0 : i32
    %2 = arith.cmpi eq, %arg1, %c0_i32 : i32
    %3 = arith.extui %2 : i1 to i32
    %c0_i32_0 = arith.constant 0 : i32
    %4 = arith.cmpi ne, %3, %c0_i32_0 : i32
    scf.if %4 {
      %cst_14 = arith.constant 0.000000e+00 : f32
      %35 = vector.broadcast %cst_14 : f32 to vector<8x128xf32>
      %c0_15 = arith.constant 0 : index
      %c0_16 = arith.constant 0 : index
      %36 = vector.load %arg5[%c0_15, %c0_16] : memref<8x128xf32, #tpu.memory_space<vmem>>, vector<8x128xf32>
      tpu.vector_store %arg5[%c0_15, %c0_16], %35 {strides = array<i32>} : memref<8x128xf32, #tpu.memory_space<vmem>>, vector<8x128xf32>,
      %cst_17 = arith.constant 0.000000e+00 : f32
      %37 = vector.broadcast %cst_17 : f32 to vector<8x128xf32>
      %c0_18 = arith.constant 0 : index
      %c0_19 = arith.constant 0 : index
      %38 = vector.load %arg6[%c0_18, %c0_19] : memref<8x128xf32, #tpu.memory_space<vmem>>, vector<8x128xf32>
      tpu.vector_store %arg6[%c0_18, %c0_19], %37 {strides = array<i32>} : memref<8x128xf32, #tpu.memory_space<vmem>>, vector<8x128xf32>,
    } else {
    }
    %c0 = arith.constant 0 : index
    %c0_1 = arith.constant 0 : index
    %5 = vector.load %arg2[%c0, %c0_1] : memref<8x128xf32, #tpu.memory_space<vmem>>, vector<8x128xf32>
    %c0_2 = arith.constant 0 : index
    %c0_3 = arith.constant 0 : index
    %6 = vector.load %arg3[%c0_2, %c0_3] : memref<8x128xf32, #tpu.memory_space<vmem>>, vector<8x128xf32>
    %cst = arith.constant 0.000000e+00 : f32
    %7 = vector.broadcast %cst : f32 to vector<8x128xf32>
    %8 = arith.maximumf %5, %7 : vector<8x128xf32>
    %9 = math.absf %5 : vector<8x128xf32>
    %cst_4 = arith.constant 0.000000e+00 : f32
    %10 = vector.broadcast %cst_4 : f32 to vector<8x128xf32>
    %11 = arith.subf %10, %9 : vector<8x128xf32>
    %12 = math.exp %11 : vector<8x128xf32>
    %13 = math.log1p %12 : vector<8x128xf32>
    %14 = arith.addf %8, %13 : vector<8x128xf32>
    %cst_5 = arith.constant 8.000000e-01 : f32
    %15 = vector.broadcast %cst_5 : f32 to vector<8x128xf32>
    %16 = arith.mulf %5, %15 : vector<8x128xf32>
    %17 = arith.subf %14, %16 : vector<8x128xf32>
    %cst_6 = arith.constant 0.000000e+00 : f32
    %18 = vector.broadcast %cst_6 : f32 to vector<8x128xf32>
    %19 = arith.maximumf %6, %18 : vector<8x128xf32>
    %20 = math.absf %6 : vector<8x128xf32>
    %cst_7 = arith.constant 0.000000e+00 : f32
    %21 = vector.broadcast %cst_7 : f32 to vector<8x128xf32>
    %22 = arith.subf %21, %20 : vector<8x128xf32>
    %23 = math.exp %22 : vector<8x128xf32>
    %24 = math.log1p %23 : vector<8x128xf32>
    %25 = arith.addf %19, %24 : vector<8x128xf32>
    %c0_i32_8 = arith.constant 0 : i32
    %26 = arith.cmpi eq, %1, %c0_i32_8 : i32
    %27 = arith.extui %26 : i1 to i32
    %c0_i32_9 = arith.constant 0 : i32
    %28 = arith.cmpi ne, %27, %c0_i32_9 : i32
    scf.if %28 {
      %35 = tpu.iota {dimensions = array<i32: 0>} : vector<8x128xi32>
      %36 = tpu.iota {dimensions = array<i32: 1>} : vector<8x128xi32>
      %c128_i32 = arith.constant 128 : i32
      %37 = vector.broadcast %c128_i32 : i32 to vector<8x128xi32>
      %38 = arith.muli %35, %37 : vector<8x128xi32>
      %39 = arith.addi %38, %36 : vector<8x128xi32>
      %c8_i32 = arith.constant 8 : i32
      %40 = vector.broadcast %c8_i32 : i32 to vector<8x128xi32>
      %41 = arith.cmpi slt, %39, %40 : vector<8x128xi32>
      %c0_14 = arith.constant 0 : index
      %c0_15 = arith.constant 0 : index
      %42 = vector.load %arg5[%c0_14, %c0_15] : memref<8x128xf32, #tpu.memory_space<vmem>>, vector<8x128xf32>
      %cst_16 = arith.constant 0.000000e+00 : f32
      %43 = vector.broadcast %cst_16 : f32 to vector<8x128xf32>
      %44 = arith.select %41, %17, %43 : vector<8x128xi1>, vector<8x128xf32>
      %45 = vector.shape_cast %44 : vector<8x128xf32> to vector<1x8x128xf32>
      %cst_17 = arith.constant dense<0.000000e+00> : vector<8x128xf32>
      %46 = vector.multi_reduction <add>, %45, %cst_17 [0] : vector<1x8x128xf32> to vector<8x128xf32>
      %47 = arith.addf %42, %46 : vector<8x128xf32>
      %c0_18 = arith.constant 0 : index
      %c0_19 = arith.constant 0 : index
      %48 = vector.load %arg5[%c0_18, %c0_19] : memref<8x128xf32, #tpu.memory_space<vmem>>, vector<8x128xf32>
      tpu.vector_store %arg5[%c0_18, %c0_19], %47 {strides = array<i32>} : memref<8x128xf32, #tpu.memory_space<vmem>>, vector<8x128xf32>,
    } else {
    }
    %c0_i32_10 = arith.constant 0 : i32
    %29 = arith.cmpi eq, %1, %c0_i32_10 : i32
    %30 = arith.extui %29 : i1 to i32
    %c0_i32_11 = arith.constant 0 : i32
    %31 = arith.cmpi ne, %30, %c0_i32_11 : i32
    scf.if %31 {
      %35 = tpu.iota {dimensions = array<i32: 0>} : vector<8x128xi32>
      %36 = tpu.iota {dimensions = array<i32: 1>} : vector<8x128xi32>
      %c128_i32 = arith.constant 128 : i32
      %37 = vector.broadcast %c128_i32 : i32 to vector<8x128xi32>
      %38 = arith.muli %35, %37 : vector<8x128xi32>
      %39 = arith.addi %38, %36 : vector<8x128xi32>
      %c8_i32 = arith.constant 8 : i32
      %40 = vector.broadcast %c8_i32 : i32 to vector<8x128xi32>
      %41 = arith.cmpi slt, %39, %40 : vector<8x128xi32>
      %c0_14 = arith.constant 0 : index
      %c0_15 = arith.constant 0 : index
      %42 = vector.load %arg6[%c0_14, %c0_15] : memref<8x128xf32, #tpu.memory_space<vmem>>, vector<8x128xf32>
      %cst_16 = arith.constant 0.000000e+00 : f32
      %43 = vector.broadcast %cst_16 : f32 to vector<8x128xf32>
      %44 = arith.select %41, %25, %43 : vector<8x128xi1>, vector<8x128xf32>
      %45 = vector.shape_cast %44 : vector<8x128xf32> to vector<1x8x128xf32>
      %cst_17 = arith.constant dense<0.000000e+00> : vector<8x128xf32>
      %46 = vector.multi_reduction <add>, %45, %cst_17 [0] : vector<1x8x128xf32> to vector<8x128xf32>
      %47 = arith.addf %42, %46 : vector<8x128xf32>
      %c0_18 = arith.constant 0 : index
      %c0_19 = arith.constant 0 : index
      %48 = vector.load %arg6[%c0_18, %c0_19] : memref<8x128xf32, #tpu.memory_space<vmem>>, vector<8x128xf32>
      tpu.vector_store %arg6[%c0_18, %c0_19], %47 {strides = array<i32>} : memref<8x128xf32, #tpu.memory_space<vmem>>, vector<8x128xf32>,
    } else {
    }
    %c0_i32_12 = arith.constant 0 : i32
    %32 = arith.cmpi eq, %arg1, %c0_i32_12 : i32
    %33 = arith.extui %32 : i1 to i32
    %c0_i32_13 = arith.constant 0 : i32
    %34 = arith.cmpi ne, %33, %c0_i32_13 : i32
    scf.if %34 {
      %c0_14 = arith.constant 0 : index
      %c0_15 = arith.constant 0 : index
      %35 = vector.load %arg5[%c0_14, %c0_15] : memref<8x128xf32, #tpu.memory_space<vmem>>, vector<8x128xf32>
      %cst_16 = arith.constant 1.250000e-01 : f32
      %36 = vector.broadcast %cst_16 : f32 to vector<8x128xf32>
      %37 = arith.mulf %35, %36 : vector<8x128xf32>
      %c0_17 = arith.constant 0 : index
      %c0_18 = arith.constant 0 : index
      %38 = vector.load %arg6[%c0_17, %c0_18] : memref<8x128xf32, #tpu.memory_space<vmem>>, vector<8x128xf32>
      %cst_19 = arith.constant 1.250000e-01 : f32
      %39 = vector.broadcast %cst_19 : f32 to vector<8x128xf32>
      %40 = arith.mulf %38, %39 : vector<8x128xf32>
      %41 = arith.addf %37, %40 : vector<8x128xf32>
      %c0_20 = arith.constant 0 : index
      %c0_21 = arith.constant 0 : index
      %42 = vector.load %arg4[%c0_20, %c0_21] : memref<8x128xf32, #tpu.memory_space<vmem>>, vector<8x128xf32>
      tpu.vector_store %arg4[%c0_20, %c0_21], %41 {strides = array<i32>} : memref<8x128xf32, #tpu.memory_space<vmem>>, vector<8x128xf32>,
    } else {
    }
    return
  }
  func.func @transform_0(%arg0: i32, %arg1: i32) -> (i32, i32) {
    %c1_i32 = arith.constant 1 : i32
    %0 = arith.muli %arg0, %c1_i32 : i32
    %1 = arith.addi %0, %arg1 : i32
    %c0_i32 = arith.constant 0 : i32
    %c0_i32_0 = arith.constant 0 : i32
    return %1, %c0_i32 : i32, i32
  }
  func.func @transform_1(%arg0: i32, %arg1: i32) -> (i32, i32) {
    %c1_i32 = arith.constant 1 : i32
    %0 = arith.muli %arg0, %c1_i32 : i32
    %1 = arith.addi %0, %arg1 : i32
    %c0_i32 = arith.constant 0 : i32
    %c0_i32_0 = arith.constant 0 : i32
    return %1, %c0_i32 : i32, i32
  }
  func.func @transform_2(%arg0: i32, %arg1: i32) -> (i32, i32) {
    %c0_i32 = arith.constant 0 : i32
    %c0_i32_0 = arith.constant 0 : i32
    return %arg0, %c0_i32 : i32, i32
  }
}

</mosaic_0001>

<llo_original>
// kernel: minimax_discriminator_loss.1
$region0: #{minimax_discriminator_loss.1}
  #allocation0 [shape = 'u32[]', space=smem, size = 0x4, offset = 0x4, fixed_abs, tag = 'smem constant byte address 0x4 - core index']
  #allocation1 [shape = 'u32[144,128]{1,0:T(1,128)}', space=vmem, size = 0x12000, scoped, tag = 'internal scratch']
  #allocation2 [shape = 'f32[8,128]{1,0:T(8,128)}', space=vmem, size = 0x1000, scoped, tag = 'scratch operand']
  #allocation3 [shape = 'f32[8,128]{1,0:T(8,128)}', space=vmem, size = 0x1000, scoped, tag = 'scratch operand']
  %s0 = inlined_call_operand.vmem [shape: f32[8,128], index: 0, kind: input, shape index: {}]
  %s1 = inlined_call_operand.vmem [shape: f32[8,128], index: 1, kind: input, shape index: {}]
  %s2 = inlined_call_operand.vmem [shape: f32[8,128], index: 2, kind: output, shape index: {}]
  %s3 = sld [smem:[#allocation0]]
  $region30: #{minimax_discriminator_loss.1} parent=0
    _
  %s5 = ssub.s32 1, %s3
  %s6 = scalar_select 0, %s5, %s3
  // Predicated region
  $region2: #{minimax_discriminator_loss.1} parent=0 // pred_check
    _
  $region3: #{minimax_discriminator_loss.1} parent=0 // pred_check_branch
    %8 = sbr.rel (0) target = $region5
  $region4: #{minimax_discriminator_loss.1} parent=0 // pred_region
    %s9 = sadd.s32 0, 0
    %p10 = scmp.lt.s32.totalorder %s9, 0
    %s11 = scalar_select %p10, %s9, 0
    %s12 = smul.addr %s11, 8
    %s13 = scalar_lea.vmem %s0, %s12
    %s14 = sadd.s32 0, 0
  $region5: #{minimax_discriminator_loss.1} parent=0 // pred_fallthru
    _
  // Predicated region
  $region6: #{minimax_discriminator_loss.1} parent=0 // pred_check
    _
  $region7: #{minimax_discriminator_loss.1} parent=0 // pred_check_branch
    %16 = sbr.rel (0) target = $region9
  $region8: #{minimax_discriminator_loss.1} parent=0 // pred_region
    %s17 = sadd.s32 0, 0
    %p18 = scmp.lt.s32.totalorder %s17, 0
    %s19 = scalar_select %p18, %s17, 0
    %s20 = smul.addr %s19, 8
    %s21 = scalar_lea.vmem %s1, %s20
    %s22 = sadd.s32 0, 0
  $region9: #{minimax_discriminator_loss.1} parent=0 // pred_fallthru
    _
  %s23 = sadd.s32 0, 0
  %p24 = scmp.lt.s32.totalorder %s23, 0
  %s25 = scalar_select %p24, %s23, 0
  %s26 = smul.addr %s25, 8
  %s27 = scalar_lea.vmem %s0, %s26
  %s28 = sadd.s32 0, 0
  %p29 = scmp.lt.s32.totalorder %s28, 0
  %s30 = scalar_select %p29, %s28, 0
  %s31 = smul.addr %s30, 8
  %s32 = scalar_lea.vmem %s1, %s31
  %s33 = sadd.s32 0, 0
  %p34 = scmp.lt.s32.totalorder %s33, 0
  %s35 = scalar_select %p34, %s33, 0
  %s36 = smul.addr %s35, 8
  %s37 = scalar_lea.vmem %s0, %s36
  %s38 = sadd.s32 0, 0
  %s39 = sadd.s32 0, 0
  %p40 = scmp.lt.s32.totalorder %s39, 0
  %s41 = scalar_select %p40, %s39, 0
  %s42 = smul.addr %s41, 8
  %s43 = scalar_lea.vmem %s1, %s42
  %s44 = sadd.s32 0, 0
  %s45 = sadd.s32 0, 0
  %p46 = scmp.eq.s32.totalorder 0, 0
  // Predicated region
  $region10: #{minimax_discriminator_loss.1} parent=0 // pred_check
    %p47 = pneg %p46
  $region11: #{minimax_discriminator_loss.1} parent=0 // pred_check_branch
    %49 = sbr.rel (%p47) target = $region13
  $region12: #{minimax_discriminator_loss.1} parent=0 // pred_region
    %50 = vst [vmem:[#allocation2] sm:$0xff] 0.0
    %51 = vst [vmem:[#allocation3] sm:$0xff] 0.0
  $region13: #{minimax_discriminator_loss.1} parent=0 // pred_fallthru
    _
  %v52 = vld [vmem:[%s37] sm:$0xff]
  %v53 = vld [vmem:[%s43] sm:$0xff]
  %v54 = vmax.f32 %v52, 0.0
  %v55 = vand.u32 2147483647, %v52
  %v56 = vsub.f32 0.0, %v55
  %v57 = vmul.f32 %v56, 1.442695
  %v58 = vpow.pop %v57
  %v59 = vadd.f32 %v58, 1.0
  %v60 = vlog2.pop %v59
  %v61 = vmul.f32 %v60, 0.6931472
  %v62 = vmul.f32 -0.5, %v58
  %v63 = vadd.f32 %v62, 1.0
  %v64 = vmul.f32 %v63, %v58
  %v65 = vand.u32 2147483647, %v58
  %vm66 = vcmp.lt.f32.partialorder %v65, 0.0004427343
  %v67 = vsel %vm66, %v64, %v61
  %v68 = vadd.f32 %v54, %v67
  %v69 = vmul.f32 %v52, 0.8
  %v70 = vsub.f32 %v68, %v69
  %v71 = vmax.f32 %v53, 0.0
  %v72 = vand.u32 2147483647, %v53
  %v73 = vsub.f32 0.0, %v72
  %v74 = vmul.f32 %v73, 1.442695
  %v75 = vpow.pop %v74
  %v76 = vadd.f32 %v75, 1.0
  %v77 = vlog2.pop %v76
  %v78 = vmul.f32 %v77, 0.6931472
  %v79 = vmul.f32 -0.5, %v75
  %v80 = vadd.f32 %v79, 1.0
  %v81 = vmul.f32 %v80, %v75
  %v82 = vand.u32 2147483647, %v75
  %vm83 = vcmp.lt.f32.partialorder %v82, 0.0004427343
  %v84 = vsel %vm83, %v81, %v78
  %v85 = vadd.f32 %v71, %v84
  %p86 = scmp.eq.s32.totalorder %s45, 0
  // Predicated region
  $region14: #{minimax_discriminator_loss.1} parent=0 // pred_check
    %p87 = pneg %p86
  $region15: #{minimax_discriminator_loss.1} parent=0 // pred_check_branch
    %89 = sbr.rel (%p87) target = $region17
  $region16: #{minimax_discriminator_loss.1} parent=0 // pred_region
    %v90 = vlaneseq
    %v91 = vshrl.u32 %v90, 7
    %v92 = vlaneseq
    %v93 = vand.u32 %v92, 127
    %v94 = vmul.u32 %v91, 128
    %v95 = vadd.s32 %v94, %v93
    %vm96 = vcmp.lt.s32.totalorder %v95, 8
    %v97 = vld [vmem:[#allocation2] sm:$0xff]
    %v98 = vsel %vm96, %v70, 0.0
    %v99 = vadd.f32 %v98, 0.0
    %v100 = vadd.f32 %v97, %v99
    %101 = vst [vmem:[#allocation2] sm:$0xff] %v100
    %v102 = vld [vmem:[#allocation3] sm:$0xff]
    %v103 = vsel %vm96, %v85, 0.0
    %v104 = vadd.f32 %v103, 0.0
    %v105 = vadd.f32 %v102, %v104
    %106 = vst [vmem:[#allocation3] sm:$0xff] %v105
  $region17: #{minimax_discriminator_loss.1} parent=0 // pred_fallthru
    _
  // Predicated region
  $region18: #{minimax_discriminator_loss.1} parent=0 // pred_check
    %p107 = pneg %p46
  $region19: #{minimax_discriminator_loss.1} parent=0 // pred_check_branch
    %109 = sbr.rel (%p107) target = $region21
  $region20: #{minimax_discriminator_loss.1} parent=0 // pred_region
    %v110 = vld [vmem:[#allocation2] sm:$0xff]
    %v111 = vmul.f32 %v110, 0.125
    %v112 = vld [vmem:[#allocation3] sm:$0xff]
    %v113 = vmul.f32 %v112, 0.125
    %v114 = vadd.f32 %v111, %v113
    %115 = vst [vmem:[%s2] sm:$0xff] %v114
  $region21: #{minimax_discriminator_loss.1} parent=0 // pred_fallthru
    _
  // Predicated region
  $region22: #{minimax_discriminator_loss.1} parent=0 // pred_check
    _
  $region23: #{minimax_discriminator_loss.1} parent=0 // pred_check_branch
    %117 = sbr.rel (0) target = $region25
  $region24: #{minimax_discriminator_loss.1} parent=0 // pred_region
    _
  $region25: #{minimax_discriminator_loss.1} parent=0 // pred_fallthru
    _
  // Predicated region
  $region26: #{minimax_discriminator_loss.1} parent=0 // pred_check
    _
  $region27: #{minimax_discriminator_loss.1} parent=0 // pred_check_branch
    %119 = sbr.rel (0) target = $region29
  $region28: #{minimax_discriminator_loss.1} parent=0 // pred_region
    _
  $region29: #{minimax_discriminator_loss.1} parent=0 // pred_fallthru
    _

</llo_original>
